<compile_context>
chip_gen: v5e
topology: v5e:2x2
jax: 0.10.0
libtpu: 0.0.40
codegen_flags: <defaults>
</compile_context>

<pallas_src>
import functools

import jax
import jax.numpy as jnp
import numpy as np
from jax.experimental import pallas as pl
from jax.experimental.pallas import tpu as pltpu


def _round_up(x, m):
    return ((x + m - 1) // m) * m


def convlstm_cell_kernel(x_ref, h_ref, c_ref, w_ref, b_ref,
                         h_out_ref, c_out_ref, comb_ref, patch_ref,
                         *, H, W, K, cin, hid, Cr, L):
    # x_ref: (1, cin, S)        flattened NCHW input   (S = H*W on lanes)
    # h_ref: (1, hid, S)        flattened hidden state
    # c_ref: (1, hid, S)        flattened cell state
    # w_ref: (4*hid, K*K*Cr)    im2col weights, input channels ordered [h, x, 0-pad]
    # b_ref: (4*hid, 1)
    # comb_ref:  VMEM (Cr, L + S + L)  zero-padded flattened [h; x] slab
    # patch_ref: VMEM (K*K*Cr, S)      im2col patch
    S = H * W
    p = K // 2
    C = cin + hid

    # ---- assemble the zero-padded, flattened [h; x] slab (aligned stores) ----
    comb_ref[...] = jnp.zeros_like(comb_ref)
    comb_ref[0:hid, L:L + S] = h_ref[0].astype(jnp.float32)   # rows [0, hid)
    comb_ref[hid:C, L:L + S] = x_ref[0].astype(jnp.float32)   # rows [hid, C)

    # Masks that zero contributions whose width-shift wraps into another row.
    col = jax.lax.broadcasted_iota(jnp.int32, (Cr, S), 1) % W
    wrap_ok = {}
    for dw in range(-p, p + 1):
        if dw != 0:
            wrap_ok[dw] = jnp.logical_and(col + dw >= 0, col + dw < W)

    # ---- im2col: each (kh, kw) tap is a lane-shifted window of the slab ----
    for kh in range(K):
        for kw in range(K):
            t = kh * K + kw
            d = (kh - p) * W + (kw - p)                 # flattened-spatial shift
            window = comb_ref[:, L + d:L + d + S]       # (Cr, S), static slice
            if kw != p:
                window = jnp.where(wrap_ok[kw - p], window, 0.0)
            patch_ref[t * Cr:(t + 1) * Cr, :] = window  # sublane-aligned write

    # ---- one MXU matmul computes the conv for all four gates at once ----
    acc = jax.lax.dot_general(
        w_ref[...], patch_ref[...],
        dimension_numbers=(((1,), (0,)), ((), ())),
        preferred_element_type=jnp.float32)             # (4*hid, S)
    acc = acc + b_ref[...]                              # bias broadcast over lanes

    # Aligned sublane slices (hid rows each), same gate order as torch.chunk.
    i = jax.nn.sigmoid(acc[0 * hid:1 * hid])
    f = jax.nn.sigmoid(acc[1 * hid:2 * hid])
    o = jax.nn.sigmoid(acc[2 * hid:3 * hid])
    g = jnp.tanh(acc[3 * hid:4 * hid])

    c_prev = c_ref[0].astype(jnp.float32)
    c_next = f * c_prev + i * g
    h_next = o * jnp.tanh(c_next)

    h_out_ref[0] = h_next.astype(h_out_ref.dtype)       # (hid, S) dense stores
    c_out_ref[0] = c_next.astype(c_out_ref.dtype)


def convlstm_cell(x_nchw, h_nchw, c_nchw, w_oihw, bias, kernel_size):
    """Matches ConvLSTMCell.forward(x, h, c): NCHW activations, OIHW weight."""
    B, Cin, H, W = x_nchw.shape
    hid = h_nchw.shape[1]
    K = int(kernel_size)
    # torch's padding=K//2 only preserves H, W for odd K.
    assert K % 2 == 1, "ConvLSTMCell Pallas kernel assumes odd kernel_size"
    p = K // 2
    C = Cin + hid
    Cr = _round_up(C, 8)              # sublane-aligned channel rows per tap
    S = H * W
    L = _round_up(p * W + p, 128)     # lane-aligned halo inside the VMEM slab
    KKC = K * K * Cr

    # Zero-cost contiguous reshapes: flattened spatial goes onto the lane axis.
    x = x_nchw.reshape(B, Cin, S)
    h = h_nchw.reshape(B, hid, S)
    c = c_nchw.reshape(B, hid, S)

    # Tiny weight repack (32 x 144 here): im2col layout with input channels
    # reordered to [h, x] and zero-padded to Cr, matching the in-kernel slab.
    w_perm = jnp.concatenate([w_oihw[:, Cin:, :, :], w_oihw[:, :Cin, :, :]], axis=1)
    w_perm = jnp.pad(w_perm, ((0, 0), (0, Cr - C), (0, 0), (0, 0)))
    w_mat = jnp.transpose(w_perm, (0, 2, 3, 1)).reshape(4 * hid, KKC)
    b2 = bias.reshape(4 * hid, 1)

    kern = functools.partial(convlstm_cell_kernel,
                             H=H, W=W, K=K, cin=Cin, hid=hid, Cr=Cr, L=L)

    flops = 2 * B * S * (4 * hid) * KKC + 10 * B * S * hid
    transcendentals = 5 * B * S * hid
    bytes_accessed = 4 * (x.size + h.size + c.size + w_mat.size + b2.size
                          + 2 * B * hid * S)

    h_next, c_next = pl.pallas_call(
        kern,
        out_shape=(jax.ShapeDtypeStruct((B, hid, S), x.dtype),
                   jax.ShapeDtypeStruct((B, hid, S), x.dtype)),
        grid_spec=pltpu.PrefetchScalarGridSpec(
            num_scalar_prefetch=0,
            grid=(B,),
            in_specs=[
                pl.BlockSpec((1, Cin, S), lambda b: (b, 0, 0)),
                pl.BlockSpec((1, hid, S), lambda b: (b, 0, 0)),
                pl.BlockSpec((1, hid, S), lambda b: (b, 0, 0)),
                pl.BlockSpec((4 * hid, KKC), lambda b: (0, 0)),
                pl.BlockSpec((4 * hid, 1), lambda b: (0, 0)),
            ],
            out_specs=[
                pl.BlockSpec((1, hid, S), lambda b: (b, 0, 0)),
                pl.BlockSpec((1, hid, S), lambda b: (b, 0, 0)),
            ],
            scratch_shapes=[
                pltpu.VMEM((Cr, L + S + L), jnp.float32),   # padded [h; x] slab
                pltpu.VMEM((KKC, S), jnp.float32),          # im2col patch
            ]),
        compiler_params=pltpu.CompilerParams(
            dimension_semantics=("parallel",)),   # v7x: one batch per TensorCore
        cost_estimate=pl.CostEstimate(flops=flops,
                                      transcendentals=transcendentals,
                                      bytes_accessed=bytes_accessed),
    )(x, h, c, w_mat, b2)

    # Free contiguous reshapes back to NCHW (PyTorch convention).
    return (h_next.reshape(B, hid, H, W), c_next.reshape(B, hid, H, W))


def convlstm_cell_reference(x_nchw, h_nchw, c_nchw, w_oihw, bias, kernel_size):
    """Pure-JAX reference mirroring the torch module."""
    p = kernel_size // 2
    combined = jnp.concatenate([x_nchw, h_nchw], axis=1)        # NCHW
    conv = jax.lax.conv_general_dilated(
        combined, w_oihw, window_strides=(1, 1),
        padding=[(p, p), (p, p)],
        dimension_numbers=('NCHW', 'OIHW', 'NCHW'))
    conv = conv + bias[None, :, None, None]
    hid = h_nchw.shape[1]
    cc_i, cc_f, cc_o, cc_g = jnp.split(conv, 4, axis=1)
    i = jax.nn.sigmoid(cc_i)
    f = jax.nn.sigmoid(cc_f)
    o = jax.nn.sigmoid(cc_o)
    g = jnp.tanh(cc_g)
    c_next = f * c_nchw + i * g
    h_next = o * jnp.tanh(c_next)
    return h_next, c_next


if __name__ == "__main__":
    # Small shapes consistent with the module: batch=2, input_dim=4,
    # hidden_dim=8, spatial 16x16, kernel_size=3.
    B, Cin, H, W = 2, 4, 16, 16
    hid = 8
    K = 3

    key = jax.random.PRNGKey(0)
    kx, kh, kc, kw_, kb = jax.random.split(key, 5)
    x = jax.random.normal(kx, (B, Cin, H, W), jnp.float32)
    h0 = jax.random.normal(kh, (B, hid, H, W), jnp.float32)
    c0 = jax.random.normal(kc, (B, hid, H, W), jnp.float32)
    # Conv2d params from __init__: weight OIHW = (4*hidden, input_dim+hidden, K, K)
    w = 0.1 * jax.random.normal(kw_, (4 * hid, Cin + hid, K, K), jnp.float32)
    b = 0.1 * jax.random.normal(kb, (4 * hid,), jnp.float32)

    h_next, c_next = convlstm_cell(x, h0, c0, w, b, K)
    jax.block_until_ready((h_next, c_next))

    h_exp, c_exp = convlstm_cell_reference(x, h0, c0, w, b, K)
    np.testing.assert_allclose(np.asarray(h_next), np.asarray(h_exp),
                               atol=1e-4, rtol=1e-4)
    np.testing.assert_allclose(np.asarray(c_next), np.asarray(c_exp),
                               atol=1e-4, rtol=1e-4)
    print("KERNEL_OK")
</pallas_src>

<mosaic_0001>
module attributes {stable_mosaic.version = 11 : i64} {
  func.func @convlstm_cell_kernel(%arg0: i32, %arg1: memref<1x4x256xf32, #tpu.memory_space<vmem>>, %arg2: memref<1x8x256xf32, #tpu.memory_space<vmem>>, %arg3: memref<1x8x256xf32, #tpu.memory_space<vmem>>, %arg4: memref<32x144xf32, #tpu.memory_space<vmem>>, %arg5: memref<32x1xf32, #tpu.memory_space<vmem>>, %arg6: memref<1x8x256xf32, #tpu.memory_space<vmem>>, %arg7: memref<1x8x256xf32, #tpu.memory_space<vmem>>, %arg8: memref<16x512xf32, #tpu.memory_space<vmem>>, %arg9: memref<144x256xf32, #tpu.memory_space<vmem>>) attributes {dimension_semantics = [#tpu.dimension_semantics<parallel>], iteration_bounds = array<i64: 2>, scalar_prefetch = 0 : i64, scratch_operands = 2 : i64, tpu.core_type = #tpu.core_type<tc>, window_params = [{transform_indices = @transform_0, window_bounds = array<i64: 1, 4, 256>}, {transform_indices = @transform_1, window_bounds = array<i64: 1, 8, 256>}, {transform_indices = @transform_2, window_bounds = array<i64: 1, 8, 256>}, {pipeline_mode = #tpu.pipeline_mode<synchronous>, transform_indices = @transform_3, window_bounds = array<i64: 32, 144>}, {pipeline_mode = #tpu.pipeline_mode<synchronous>, transform_indices = @transform_4, window_bounds = array<i64: 32, 1>}, {transform_indices = @transform_5, window_bounds = array<i64: 1, 8, 256>}, {transform_indices = @transform_6, window_bounds = array<i64: 1, 8, 256>}]} {
    %cst = arith.constant 0.000000e+00 : f32
    %0 = vector.broadcast %cst : f32 to vector<16x512xf32>
    %c0 = arith.constant 0 : index
    %c0_0 = arith.constant 0 : index
    %1 = vector.load %arg8[%c0, %c0_0] : memref<16x512xf32, #tpu.memory_space<vmem>>, vector<16x512xf32>
    tpu.vector_store %arg8[%c0, %c0_0], %0 {strides = array<i32>} : memref<16x512xf32, #tpu.memory_space<vmem>>, vector<16x512xf32>,
    %c0_1 = arith.constant 0 : index
    %c0_2 = arith.constant 0 : index
    %c0_3 = arith.constant 0 : index
    %2 = vector.load %arg2[%c0_1, %c0_2, %c0_3] : memref<1x8x256xf32, #tpu.memory_space<vmem>>, vector<1x8x256xf32>
    %3 = vector.shape_cast %2 : vector<1x8x256xf32> to vector<8x256xf32>
    %c0_4 = arith.constant 0 : index
    %c128 = arith.constant 128 : index
    %4 = vector.load %arg8[%c0_4, %c128] : memref<16x512xf32, #tpu.memory_space<vmem>>, vector<8x256xf32>
    tpu.vector_store %arg8[%c0_4, %c128], %3 {strides = array<i32>} : memref<16x512xf32, #tpu.memory_space<vmem>>, vector<8x256xf32>,
    %c0_5 = arith.constant 0 : index
    %c0_6 = arith.constant 0 : index
    %c0_7 = arith.constant 0 : index
    %5 = vector.load %arg1[%c0_5, %c0_6, %c0_7] : memref<1x4x256xf32, #tpu.memory_space<vmem>>, vector<1x4x256xf32>
    %6 = vector.shape_cast %5 : vector<1x4x256xf32> to vector<4x256xf32>
    %c8 = arith.constant 8 : index
    %c128_8 = arith.constant 128 : index
    %7 = vector.load %arg8[%c8, %c128_8] : memref<16x512xf32, #tpu.memory_space<vmem>>, vector<4x256xf32>
    tpu.vector_store %arg8[%c8, %c128_8], %6 {strides = array<i32>} : memref<16x512xf32, #tpu.memory_space<vmem>>, vector<4x256xf32>,
    %8 = tpu.iota {dimensions = array<i32: 1>} : vector<16x256xi32>
    %c16_i32 = arith.constant 16 : i32
    %c0_i32 = arith.constant 0 : i32
    %9 = arith.cmpi eq, %c16_i32, %c0_i32 : i32
    %c1_i32 = arith.constant 1 : i32
    %10 = arith.select %9, %c1_i32, %c16_i32 : i32
    %11 = vector.broadcast %10 : i32 to vector<16x256xi32>
    %12 = arith.remsi %8, %11 : vector<16x256xi32>
    %c0_i32_9 = arith.constant 0 : i32
    %13 = vector.broadcast %c0_i32_9 : i32 to vector<16x256xi32>
    %14 = arith.cmpi ne, %12, %13 : vector<16x256xi32>
    %c0_i32_10 = arith.constant 0 : i32
    %15 = vector.broadcast %c0_i32_10 : i32 to vector<16x256xi32>
    %16 = arith.cmpi slt, %12, %15 : vector<16x256xi32>
    %c0_i32_11 = arith.constant 0 : i32
    %17 = arith.cmpi slt, %10, %c0_i32_11 : i32
    %18 = vector.broadcast %17 : i1 to vector<16x256xi1>
    %19 = vector.broadcast %18 : vector<16x256xi1> to vector<16x256xi1>
    %20 = arith.xori %16, %19 : vector<16x256xi1>
    %21 = arith.andi %20, %14 : vector<16x256xi1>
    %22 = vector.broadcast %10 : i32 to vector<16x256xi32>
    %23 = arith.addi %12, %22 : vector<16x256xi32>
    %24 = arith.select %21, %23, %12 : vector<16x256xi1>, vector<16x256xi32>
    %c-1_i32 = arith.constant -1 : i32
    %25 = vector.broadcast %c-1_i32 : i32 to vector<16x256xi32>
    %26 = arith.addi %24, %25 : vector<16x256xi32>
    %c0_i32_12 = arith.constant 0 : i32
    %27 = vector.broadcast %c0_i32_12 : i32 to vector<16x256xi32>
    %28 = arith.cmpi sge, %26, %27 : vector<16x256xi32>
    %c-1_i32_13 = arith.constant -1 : i32
    %29 = vector.broadcast %c-1_i32_13 : i32 to vector<16x256xi32>
    %30 = arith.addi %24, %29 : vector<16x256xi32>
    %c16_i32_14 = arith.constant 16 : i32
    %31 = vector.broadcast %c16_i32_14 : i32 to vector<16x256xi32>
    %32 = arith.cmpi slt, %30, %31 : vector<16x256xi32>
    %33 = arith.andi %28, %32 : vector<16x256xi1>
    %c1_i32_15 = arith.constant 1 : i32
    %34 = vector.broadcast %c1_i32_15 : i32 to vector<16x256xi32>
    %35 = arith.addi %24, %34 : vector<16x256xi32>
    %c0_i32_16 = arith.constant 0 : i32
    %36 = vector.broadcast %c0_i32_16 : i32 to vector<16x256xi32>
    %37 = arith.cmpi sge, %35, %36 : vector<16x256xi32>
    %c1_i32_17 = arith.constant 1 : i32
    %38 = vector.broadcast %c1_i32_17 : i32 to vector<16x256xi32>
    %39 = arith.addi %24, %38 : vector<16x256xi32>
    %c16_i32_18 = arith.constant 16 : i32
    %40 = vector.broadcast %c16_i32_18 : i32 to vector<16x256xi32>
    %41 = arith.cmpi slt, %39, %40 : vector<16x256xi32>
    %42 = arith.andi %37, %41 : vector<16x256xi1>
    %c0_19 = arith.constant 0 : index
    %c111 = arith.constant 111 : index
    %43 = vector.load %arg8[%c0_19, %c111] : memref<16x512xf32, #tpu.memory_space<vmem>>, vector<16x256xf32>
    %cst_20 = arith.constant 0.000000e+00 : f32
    %44 = vector.broadcast %cst_20 : f32 to vector<16x256xf32>
    %45 = arith.select %33, %43, %44 : vector<16x256xi1>, vector<16x256xf32>
    %c0_21 = arith.constant 0 : index
    %c0_22 = arith.constant 0 : index
    %46 = vector.load %arg9[%c0_21, %c0_22] : memref<144x256xf32, #tpu.memory_space<vmem>>, vector<16x256xf32>
    tpu.vector_store %arg9[%c0_21, %c0_22], %45 {strides = array<i32>} : memref<144x256xf32, #tpu.memory_space<vmem>>, vector<16x256xf32>,
    %c0_23 = arith.constant 0 : index
    %c112 = arith.constant 112 : index
    %47 = vector.load %arg8[%c0_23, %c112] : memref<16x512xf32, #tpu.memory_space<vmem>>, vector<16x256xf32>
    %c16 = arith.constant 16 : index
    %c0_24 = arith.constant 0 : index
    %48 = vector.load %arg9[%c16, %c0_24] : memref<144x256xf32, #tpu.memory_space<vmem>>, vector<16x256xf32>
    tpu.vector_store %arg9[%c16, %c0_24], %47 {strides = array<i32>} : memref<144x256xf32, #tpu.memory_space<vmem>>, vector<16x256xf32>,
    %c0_25 = arith.constant 0 : index
    %c113 = arith.constant 113 : index
    %49 = vector.load %arg8[%c0_25, %c113] : memref<16x512xf32, #tpu.memory_space<vmem>>, vector<16x256xf32>
    %cst_26 = arith.constant 0.000000e+00 : f32
    %50 = vector.broadcast %cst_26 : f32 to vector<16x256xf32>
    %51 = arith.select %42, %49, %50 : vector<16x256xi1>, vector<16x256xf32>
    %c32 = arith.constant 32 : index
    %c0_27 = arith.constant 0 : index
    %52 = vector.load %arg9[%c32, %c0_27] : memref<144x256xf32, #tpu.memory_space<vmem>>, vector<16x256xf32>
    tpu.vector_store %arg9[%c32, %c0_27], %51 {strides = array<i32>} : memref<144x256xf32, #tpu.memory_space<vmem>>, vector<16x256xf32>,
    %c0_28 = arith.constant 0 : index
    %c127 = arith.constant 127 : index
    %53 = vector.load %arg8[%c0_28, %c127] : memref<16x512xf32, #tpu.memory_space<vmem>>, vector<16x256xf32>
    %cst_29 = arith.constant 0.000000e+00 : f32
    %54 = vector.broadcast %cst_29 : f32 to vector<16x256xf32>
    %55 = arith.select %33, %53, %54 : vector<16x256xi1>, vector<16x256xf32>
    %c48 = arith.constant 48 : index
    %c0_30 = arith.constant 0 : index
    %56 = vector.load %arg9[%c48, %c0_30] : memref<144x256xf32, #tpu.memory_space<vmem>>, vector<16x256xf32>
    tpu.vector_store %arg9[%c48, %c0_30], %55 {strides = array<i32>} : memref<144x256xf32, #tpu.memory_space<vmem>>, vector<16x256xf32>,
    %c0_31 = arith.constant 0 : index
    %c128_32 = arith.constant 128 : index
    %57 = vector.load %arg8[%c0_31, %c128_32] : memref<16x512xf32, #tpu.memory_space<vmem>>, vector<16x256xf32>
    %c64 = arith.constant 64 : index
    %c0_33 = arith.constant 0 : index
    %58 = vector.load %arg9[%c64, %c0_33] : memref<144x256xf32, #tpu.memory_space<vmem>>, vector<16x256xf32>
    tpu.vector_store %arg9[%c64, %c0_33], %57 {strides = array<i32>} : memref<144x256xf32, #tpu.memory_space<vmem>>, vector<16x256xf32>,
    %c0_34 = arith.constant 0 : index
    %c129 = arith.constant 129 : index
    %59 = vector.load %arg8[%c0_34, %c129] : memref<16x512xf32, #tpu.memory_space<vmem>>, vector<16x256xf32>
    %cst_35 = arith.constant 0.000000e+00 : f32
    %60 = vector.broadcast %cst_35 : f32 to vector<16x256xf32>
    %61 = arith.select %42, %59, %60 : vector<16x256xi1>, vector<16x256xf32>
    %c80 = arith.constant 80 : index
    %c0_36 = arith.constant 0 : index
    %62 = vector.load %arg9[%c80, %c0_36] : memref<144x256xf32, #tpu.memory_space<vmem>>, vector<16x256xf32>
    tpu.vector_store %arg9[%c80, %c0_36], %61 {strides = array<i32>} : memref<144x256xf32, #tpu.memory_space<vmem>>, vector<16x256xf32>,
    %c0_37 = arith.constant 0 : index
    %c143 = arith.constant 143 : index
    %63 = vector.load %arg8[%c0_37, %c143] : memref<16x512xf32, #tpu.memory_space<vmem>>, vector<16x256xf32>
    %cst_38 = arith.constant 0.000000e+00 : f32
    %64 = vector.broadcast %cst_38 : f32 to vector<16x256xf32>
    %65 = arith.select %33, %63, %64 : vector<16x256xi1>, vector<16x256xf32>
    %c96 = arith.constant 96 : index
    %c0_39 = arith.constant 0 : index
    %66 = vector.load %arg9[%c96, %c0_39] : memref<144x256xf32, #tpu.memory_space<vmem>>, vector<16x256xf32>
    tpu.vector_store %arg9[%c96, %c0_39], %65 {strides = array<i32>} : memref<144x256xf32, #tpu.memory_space<vmem>>, vector<16x256xf32>,
    %c0_40 = arith.constant 0 : index
    %c144 = arith.constant 144 : index
    %67 = vector.load %arg8[%c0_40, %c144] : memref<16x512xf32, #tpu.memory_space<vmem>>, vector<16x256xf32>
    %c112_41 = arith.constant 112 : index
    %c0_42 = arith.constant 0 : index
    %68 = vector.load %arg9[%c112_41, %c0_42] : memref<144x256xf32, #tpu.memory_space<vmem>>, vector<16x256xf32>
    tpu.vector_store %arg9[%c112_41, %c0_42], %67 {strides = array<i32>} : memref<144x256xf32, #tpu.memory_space<vmem>>, vector<16x256xf32>,
    %c0_43 = arith.constant 0 : index
    %c145 = arith.constant 145 : index
    %69 = vector.load %arg8[%c0_43, %c145] : memref<16x512xf32, #tpu.memory_space<vmem>>, vector<16x256xf32>
    %cst_44 = arith.constant 0.000000e+00 : f32
    %70 = vector.broadcast %cst_44 : f32 to vector<16x256xf32>
    %71 = arith.select %42, %69, %70 : vector<16x256xi1>, vector<16x256xf32>
    %c128_45 = arith.constant 128 : index
    %c0_46 = arith.constant 0 : index
    %72 = vector.load %arg9[%c128_45, %c0_46] : memref<144x256xf32, #tpu.memory_space<vmem>>, vector<16x256xf32>
    tpu.vector_store %arg9[%c128_45, %c0_46], %71 {strides = array<i32>} : memref<144x256xf32, #tpu.memory_space<vmem>>, vector<16x256xf32>,
    %c0_47 = arith.constant 0 : index
    %c0_48 = arith.constant 0 : index
    %73 = vector.load %arg4[%c0_47, %c0_48] : memref<32x144xf32, #tpu.memory_space<vmem>>, vector<32x144xf32>
    %c0_49 = arith.constant 0 : index
    %c0_50 = arith.constant 0 : index
    %74 = vector.load %arg9[%c0_49, %c0_50] : memref<144x256xf32, #tpu.memory_space<vmem>>, vector<144x256xf32>
    %cst_51 = arith.constant dense<0.000000e+00> : vector<32x256xf32>
    %75 = tpu.matmul %73, %74, %cst_51 {dimension_numbers = #tpu.dot_dimension_numbers<[1], [0], [0], [1], [0, 0, 1, 1], [], []>} : vector<32x144xf32>, vector<144x256xf32>, vector<32x256xf32> -> vector<32x256xf32>
    %c0_52 = arith.constant 0 : index
    %c0_53 = arith.constant 0 : index
    %76 = vector.load %arg5[%c0_52, %c0_53] : memref<32x1xf32, #tpu.memory_space<vmem>>, vector<32x1xf32>
    %77 = vector.broadcast %76 : vector<32x1xf32> to vector<32x256xf32>
    %78 = arith.addf %75, %77 : vector<32x256xf32>
    %79 = vector.extract_strided_slice %78 {offsets = [0, 0], sizes = [8, 256], strides = [1, 1]} : vector<32x256xf32> to vector<8x256xf32>
    %80 = arith.negf %79 : vector<8x256xf32>
    %81 = math.exp %80 : vector<8x256xf32>
    %cst_54 = arith.constant 1.000000e+00 : f32
    %82 = vector.broadcast %cst_54 : f32 to vector<8x256xf32>
    %83 = arith.addf %82, %81 : vector<8x256xf32>
    %84 = arith.divf %82, %83 : vector<8x256xf32>
    %85 = vector.extract_strided_slice %78 {offsets = [8, 0], sizes = [8, 256], strides = [1, 1]} : vector<32x256xf32> to vector<8x256xf32>
    %86 = arith.negf %85 : vector<8x256xf32>
    %87 = math.exp %86 : vector<8x256xf32>
    %cst_55 = arith.constant 1.000000e+00 : f32
    %88 = vector.broadcast %cst_55 : f32 to vector<8x256xf32>
    %89 = arith.addf %88, %87 : vector<8x256xf32>
    %90 = arith.divf %88, %89 : vector<8x256xf32>
    %91 = vector.extract_strided_slice %78 {offsets = [16, 0], sizes = [8, 256], strides = [1, 1]} : vector<32x256xf32> to vector<8x256xf32>
    %92 = arith.negf %91 : vector<8x256xf32>
    %93 = math.exp %92 : vector<8x256xf32>
    %cst_56 = arith.constant 1.000000e+00 : f32
    %94 = vector.broadcast %cst_56 : f32 to vector<8x256xf32>
    %95 = arith.addf %94, %93 : vector<8x256xf32>
    %96 = arith.divf %94, %95 : vector<8x256xf32>
    %97 = vector.extract_strided_slice %78 {offsets = [24, 0], sizes = [8, 256], strides = [1, 1]} : vector<32x256xf32> to vector<8x256xf32>
    %98 = math.tanh %97 : vector<8x256xf32>
    %c0_57 = arith.constant 0 : index
    %c0_58 = arith.constant 0 : index
    %c0_59 = arith.constant 0 : index
    %99 = vector.load %arg3[%c0_57, %c0_58, %c0_59] : memref<1x8x256xf32, #tpu.memory_space<vmem>>, vector<1x8x256xf32>
    %100 = vector.shape_cast %99 : vector<1x8x256xf32> to vector<8x256xf32>
    %101 = arith.mulf %90, %100 : vector<8x256xf32>
    %102 = arith.mulf %84, %98 : vector<8x256xf32>
    %103 = arith.addf %101, %102 : vector<8x256xf32>
    %104 = math.tanh %103 : vector<8x256xf32>
    %105 = arith.mulf %96, %104 : vector<8x256xf32>
    %c0_60 = arith.constant 0 : index
    %c0_61 = arith.constant 0 : index
    %c0_62 = arith.constant 0 : index
    %106 = vector.load %arg6[%c0_60, %c0_61, %c0_62] : memref<1x8x256xf32, #tpu.memory_space<vmem>>, vector<1x8x256xf32>
    %107 = vector.shape_cast %106 : vector<1x8x256xf32> to vector<8x256xf32>
    %108 = vector.shape_cast %105 : vector<8x256xf32> to vector<1x8x256xf32>
    tpu.vector_store %arg6[%c0_60, %c0_61, %c0_62], %108 {strides = array<i32>} : memref<1x8x256xf32, #tpu.memory_space<vmem>>, vector<1x8x256xf32>,
    %c0_63 = arith.constant 0 : index
    %c0_64 = arith.constant 0 : index
    %c0_65 = arith.constant 0 : index
    %109 = vector.load %arg7[%c0_63, %c0_64, %c0_65] : memref<1x8x256xf32, #tpu.memory_space<vmem>>, vector<1x8x256xf32>
    %110 = vector.shape_cast %109 : vector<1x8x256xf32> to vector<8x256xf32>
    %111 = vector.shape_cast %103 : vector<8x256xf32> to vector<1x8x256xf32>
    tpu.vector_store %arg7[%c0_63, %c0_64, %c0_65], %111 {strides = array<i32>} : memref<1x8x256xf32, #tpu.memory_space<vmem>>, vector<1x8x256xf32>,
    return
  }
  func.func @transform_0(%arg0: i32) -> (i32, i32, i32) {
    %c0_i32 = arith.constant 0 : i32
    %c0_i32_0 = arith.constant 0 : i32
    %c0_i32_1 = arith.constant 0 : i32
    return %arg0, %c0_i32, %c0_i32_0 : i32, i32, i32
  }
  func.func @transform_1(%arg0: i32) -> (i32, i32, i32) {
    %c0_i32 = arith.constant 0 : i32
    %c0_i32_0 = arith.constant 0 : i32
    %c0_i32_1 = arith.constant 0 : i32
    return %arg0, %c0_i32, %c0_i32_0 : i32, i32, i32
  }
  func.func @transform_2(%arg0: i32) -> (i32, i32, i32) {
    %c0_i32 = arith.constant 0 : i32
    %c0_i32_0 = arith.constant 0 : i32
    %c0_i32_1 = arith.constant 0 : i32
    return %arg0, %c0_i32, %c0_i32_0 : i32, i32, i32
  }
  func.func @transform_3(%arg0: i32) -> (i32, i32) {
    %c0_i32 = arith.constant 0 : i32
    %c0_i32_0 = arith.constant 0 : i32
    %c0_i32_1 = arith.constant 0 : i32
    return %c0_i32, %c0_i32_0 : i32, i32
  }
  func.func @transform_4(%arg0: i32) -> (i32, i32) {
    %c0_i32 = arith.constant 0 : i32
    %c0_i32_0 = arith.constant 0 : i32
    %c0_i32_1 = arith.constant 0 : i32
    return %c0_i32, %c0_i32_0 : i32, i32
  }
  func.func @transform_5(%arg0: i32) -> (i32, i32, i32) {
    %c0_i32 = arith.constant 0 : i32
    %c0_i32_0 = arith.constant 0 : i32
    %c0_i32_1 = arith.constant 0 : i32
    return %arg0, %c0_i32, %c0_i32_0 : i32, i32, i32
  }
  func.func @transform_6(%arg0: i32) -> (i32, i32, i32) {
    %c0_i32 = arith.constant 0 : i32
    %c0_i32_0 = arith.constant 0 : i32
    %c0_i32_1 = arith.constant 0 : i32
    return %arg0, %c0_i32, %c0_i32_0 : i32, i32, i32
  }
}

</mosaic_0001>

<llo_original>
// kernel: tpu_custom_call.1
$region0: #{tpu_custom_call.1}
  #allocation0 [shape = 'u32[]', space=smem, size = 0x4, offset = 0x4, fixed_abs, tag = 'smem constant byte address 0x4 - core index']
  #allocation1 [shape = 'u32[72,128]{1,0:T(1,128)}', space=vmem, size = 0x9000, scoped, tag = 'internal scratch']
  #allocation2 [shape = 'f32[16,512]{1,0:T(8,128)}', space=vmem, size = 0x8000, scoped, tag = 'scratch operand']
  #allocation3 [shape = 'f32[144,256]{1,0:T(8,128)}', space=vmem, size = 0x24000, scoped, tag = 'scratch operand']
  %s0 = inlined_call_operand.hbm [shape: f32[2,4,256], index: 0, kind: input, shape index: {}]
  %s1 = inlined_call_operand.vmem [shape: f32[2,8,256], index: 1, kind: input, shape index: {}]
  %s2 = inlined_call_operand.hbm [shape: f32[2,8,256], index: 2, kind: input, shape index: {}]
  %s3 = inlined_call_operand.hbm [shape: f32[32,144], index: 3, kind: input, shape index: {}]
  %s4 = inlined_call_operand.vmem [shape: f32[32,1], index: 4, kind: input, shape index: {}]
  %s5 = inlined_call_operand.hbm [shape: f32[2,8,256], index: 5, kind: output, shape index: {0}]
  %s6 = inlined_call_operand.hbm [shape: f32[2,8,256], index: 6, kind: output, shape index: {1}]
  %7 = xla_tuple %s5, %s6
  %s8 = sld [smem:[#allocation0]]
  $region73: #{tpu_custom_call.1} parent=0
    _
  %s10 = ssub.s32 1, %s8
  %s11 = scalar_select 0, %s10, %s8
  $region1: #{tpu_custom_call.1} parent=0
    #allocation4 [shape = 'u8[8192]{0}', space=vmem, size = 0x2000, scoped, tag = 'input window, operand 0']
    #allocation5 [shape = 's32[2]{0}', space=sflag, size = 0x8, scoped, tag = 'scoped memory for tpu_custom_call.1']
    #allocation6 [shape = 's32[2]{0}', space=sflag, size = 0x8, scoped, tag = 'scoped memory for tpu_custom_call.1']
    #allocation7 [shape = 'u8[16384]{0}', space=vmem, size = 0x4000, scoped, tag = 'input window, operand 2']
    #allocation8 [shape = 's32[2]{0}', space=sflag, size = 0x8, scoped, tag = 'scoped memory for tpu_custom_call.1']
    #allocation9 [shape = 'u8[32768]{0}', space=vmem, size = 0x8000, scoped, tag = 'input window, operand 3, single buffered']
    #allocation10 [shape = 'u8[16384]{0}', space=vmem, size = 0x4000, scoped, tag = 'output window, operand 0']
    #allocation11 [shape = 'u8[16384]{0}', space=vmem, size = 0x4000, scoped, tag = 'output window, operand 1']
    #allocation12 [shape = 's32[2]{0}', space=sflag, size = 0x8, scoped, tag = 'scoped memory for tpu_custom_call.1']
    %12 = vsyncpa [#allocation5], 0
    %s13 = scalar_lea.sflag [#allocation5], 1
    %14 = vsyncpa %s13, 0
    %15 = vsyncpa [#allocation8], 0
    %s16 = scalar_lea.sflag [#allocation8], 1
    %17 = vsyncpa %s16, 0
    %18 = vsyncpa [#allocation6], 0
    %s19 = scalar_lea.sflag [#allocation6], 1
    %20 = vsyncpa %s19, 0
    %21 = vsyncpa [#allocation12], 0
    %s22 = scalar_lea.sflag [#allocation12], 1
    %23 = vsyncpa %s22, 0
    loop: start=0, step=1, limit=4
    $region2: #{tpu_custom_call.1} parent=1 // loop_pre_header
      _
    $region3: #{tpu_custom_call.1} parent=1 // loop_header
      %s25 = sphi 0, %s29
      %p26 = scmp.ge.s32.totalorder %s25, 4
      %s35 = sphi 0, %s37
      %s38 = sphi 0, %s35
      %s39 = sphi 0, %s38
      %s55 = sphi 0, %s39
      %s61 = sphi 0, %s63
      %s64 = sphi 0, %s61
      %s65 = sphi 0, %s64
      %s81 = sphi 0, %s65
      %s87 = sphi 0, %s89
      %s90 = sphi 0, %s87
      %s91 = sphi 0, %s90
      %s107 = sphi 0, %s91
      %s111 = sphi 0, %s111
      %s113 = sphi 0, %s111
      %s114 = sphi 0, %s113
      %s128 = sphi 0, %s114
      %s132 = sphi 0, %s132
      %s134 = sphi 0, %s132
      %s135 = sphi 0, %s134
      %s149 = sphi 0, %s135
      %s155 = sphi 0, %s157
      %s158 = sphi 0, %s155
      %s159 = sphi 0, %s158
      %s175 = sphi 0, %s159
      %s181 = sphi 0, %s183
      %s184 = sphi 0, %s181
      %s185 = sphi 0, %s184
      %s201 = sphi 0, %s185
    $region4: #{tpu_custom_call.1} parent=1 // loop_header_branch
      %28 = sbr.rel (%p26) target = $region8
    $region5: #{tpu_custom_call.1} parent=1 // loop_body
      %s30 = ssub.s32 %s25, 1
      %s31 = ssub.s32 %s25, 2
      %s32 = sadd.s32 %s25, 1
      %s33 = ssub.s32 %s25, %s32
      %p34 = scmp.eq.s32.totalorder %s33, 0
      %s36 = sadd.s32 %s35, 1
      %s37 = scalar_select %p34, %s35, %s36
      %p40 = pneg %p34
      %p41 = scmp.eq.s32.totalorder %s25, 1
      %p42 = por %p40, %p41
      %p43 = scmp.ne.s32.totalorder %s35, %s38
      %p44 = scmp.eq.s32.totalorder %s25, 0
      %p45 = por %p43, %p44
      %p46 = scmp.ne.s32.totalorder %s35, %s38
      %p47 = scmp.eq.s32.totalorder %s30, 1
      %p48 = por %p46, %p47
      %p49 = scmp.ne.s32.totalorder %s38, %s39
      %p50 = scmp.eq.s32.totalorder %s30, 0
      %p51 = por %p49, %p50
      %p52 = scmp.ne.s32.totalorder %s38, %s39
      %p53 = scmp.eq.s32.totalorder %s31, 1
      %p54 = por %p52, %p53
      %p56 = scmp.ne.s32.totalorder %s39, %s55
      %p57 = scmp.eq.s32.totalorder %s31, 0
      %p58 = por %p56, %p57
      %s59 = ssub.s32 %s25, %s32
      %p60 = scmp.eq.s32.totalorder %s59, 0
      %s62 = sadd.s32 %s61, 1
      %s63 = scalar_select %p60, %s61, %s62
      %p66 = pneg %p60
      %p67 = scmp.eq.s32.totalorder %s25, 1
      %p68 = por %p66, %p67
      %p69 = scmp.ne.s32.totalorder %s61, %s64
      %p70 = scmp.eq.s32.totalorder %s25, 0
      %p71 = por %p69, %p70
      %p72 = scmp.ne.s32.totalorder %s61, %s64
      %p73 = scmp.eq.s32.totalorder %s30, 1
      %p74 = por %p72, %p73
      %p75 = scmp.ne.s32.totalorder %s64, %s65
      %p76 = scmp.eq.s32.totalorder %s30, 0
      %p77 = por %p75, %p76
      %p78 = scmp.ne.s32.totalorder %s64, %s65
      %p79 = scmp.eq.s32.totalorder %s31, 1
      %p80 = por %p78, %p79
      %p82 = scmp.ne.s32.totalorder %s65, %s81
      %p83 = scmp.eq.s32.totalorder %s31, 0
      %p84 = por %p82, %p83
      %s85 = ssub.s32 %s25, %s32
      %p86 = scmp.eq.s32.totalorder %s85, 0
      %s88 = sadd.s32 %s87, 1
      %s89 = scalar_select %p86, %s87, %s88
      %p92 = pneg %p86
      %p93 = scmp.eq.s32.totalorder %s25, 1
      %p94 = por %p92, %p93
      %p95 = scmp.ne.s32.totalorder %s87, %s90
      %p96 = scmp.eq.s32.totalorder %s25, 0
      %p97 = por %p95, %p96
      %p98 = scmp.ne.s32.totalorder %s87, %s90
      %p99 = scmp.eq.s32.totalorder %s30, 1
      %p100 = por %p98, %p99
      %p101 = scmp.ne.s32.totalorder %s90, %s91
      %p102 = scmp.eq.s32.totalorder %s30, 0
      %p103 = por %p101, %p102
      %p104 = scmp.ne.s32.totalorder %s90, %s91
      %p105 = scmp.eq.s32.totalorder %s31, 1
      %p106 = por %p104, %p105
      %p108 = scmp.ne.s32.totalorder %s91, %s107
      %p109 = scmp.eq.s32.totalorder %s31, 0
      %p110 = por %p108, %p109
      %s112 = sadd.s32 %s111, 1
      %p115 = scmp.eq.s32.totalorder %s25, 1
      %p116 = scmp.ne.s32.totalorder %s111, %s113
      %p117 = scmp.eq.s32.totalorder %s25, 0
      %p118 = por %p116, %p117
      %p119 = scmp.ne.s32.totalorder %s111, %s113
      %p120 = scmp.eq.s32.totalorder %s30, 1
      %p121 = por %p119, %p120
      %p122 = scmp.ne.s32.totalorder %s113, %s114
      %p123 = scmp.eq.s32.totalorder %s30, 0
      %p124 = por %p122, %p123
      %p125 = scmp.ne.s32.totalorder %s113, %s114
      %p126 = scmp.eq.s32.totalorder %s31, 1
      %p127 = por %p125, %p126
      %p129 = scmp.ne.s32.totalorder %s114, %s128
      %p130 = scmp.eq.s32.totalorder %s31, 0
      %p131 = por %p129, %p130
      %s133 = sadd.s32 %s132, 1
      %p136 = scmp.eq.s32.totalorder %s25, 1
      %p137 = scmp.ne.s32.totalorder %s132, %s134
      %p138 = scmp.eq.s32.totalorder %s25, 0
      %p139 = por %p137, %p138
      %p140 = scmp.ne.s32.totalorder %s132, %s134
      %p141 = scmp.eq.s32.totalorder %s30, 1
      %p142 = por %p140, %p141
      %p143 = scmp.ne.s32.totalorder %s134, %s135
      %p144 = scmp.eq.s32.totalorder %s30, 0
      %p145 = por %p143, %p144
      %p146 = scmp.ne.s32.totalorder %s134, %s135
      %p147 = scmp.eq.s32.totalorder %s31, 1
      %p148 = por %p146, %p147
      %p150 = scmp.ne.s32.totalorder %s135, %s149
      %p151 = scmp.eq.s32.totalorder %s31, 0
      %p152 = por %p150, %p151
      %s153 = ssub.s32 %s25, %s32
      %p154 = scmp.eq.s32.totalorder %s153, 0
      %s156 = sadd.s32 %s155, 1
      %s157 = scalar_select %p154, %s155, %s156
      %p160 = pneg %p154
      %p161 = scmp.eq.s32.totalorder %s25, 1
      %p162 = por %p160, %p161
      %p163 = scmp.ne.s32.totalorder %s155, %s158
      %p164 = scmp.eq.s32.totalorder %s25, 0
      %p165 = por %p163, %p164
      %p166 = scmp.ne.s32.totalorder %s155, %s158
      %p167 = scmp.eq.s32.totalorder %s30, 1
      %p168 = por %p166, %p167
      %p169 = scmp.ne.s32.totalorder %s158, %s159
      %p170 = scmp.eq.s32.totalorder %s30, 0
      %p171 = por %p169, %p170
      %p172 = scmp.ne.s32.totalorder %s158, %s159
      %p173 = scmp.eq.s32.totalorder %s31, 1
      %p174 = por %p172, %p173
      %p176 = scmp.ne.s32.totalorder %s159, %s175
      %p177 = scmp.eq.s32.totalorder %s31, 0
      %p178 = por %p176, %p177
      %s179 = ssub.s32 %s25, %s32
      %p180 = scmp.eq.s32.totalorder %s179, 0
      %s182 = sadd.s32 %s181, 1
      %s183 = scalar_select %p180, %s181, %s182
      %p186 = pneg %p180
      %p187 = scmp.eq.s32.totalorder %s25, 1
      %p188 = por %p186, %p187
      %p189 = scmp.ne.s32.totalorder %s181, %s184
      %p190 = scmp.eq.s32.totalorder %s25, 0
      %p191 = por %p189, %p190
      %p192 = scmp.ne.s32.totalorder %s181, %s184
      %p193 = scmp.eq.s32.totalorder %s30, 1
      %p194 = por %p192, %p193
      %p195 = scmp.ne.s32.totalorder %s184, %s185
      %p196 = scmp.eq.s32.totalorder %s30, 0
      %p197 = por %p195, %p196
      %p198 = scmp.ne.s32.totalorder %s184, %s185
      %p199 = scmp.eq.s32.totalorder %s31, 1
      %p200 = por %p198, %p199
      %p202 = scmp.ne.s32.totalorder %s185, %s201
      %p203 = scmp.eq.s32.totalorder %s31, 0
      %p204 = por %p202, %p203
      %p205 = scmp.le.s32.totalorder 1, %s25
      %p206 = scmp.lt.s32.totalorder %s25, 3
      %p207 = pnand %p205, %p206
      %p208 = pneg %p207
      // Predicated region
      $region9: #{tpu_custom_call.1} parent=5 // pred_check
        _
      $region10: #{tpu_custom_call.1} parent=5 // pred_check_branch
        %210 = sbr.rel (%p207) target = $region12
      $region11: #{tpu_custom_call.1} parent=5 // pred_region
        %s211 = ssub.s32 %s25, 1
        // Predicated region
        $region13: #{tpu_custom_call.1} parent=11 // pred_check
          %p212 = pneg %p124
        $region14: #{tpu_custom_call.1} parent=11 // pred_check_branch
          %214 = sbr.rel (%p212) target = $region16
        $region15: #{tpu_custom_call.1} parent=11 // pred_region
          %216 = vsyncadd [#allocation8], 0
          %s217 = sshll.u32 %s3, 4
          %s218 = int_to_ptr.hbm [resolvable:$true] %s217
          %s219 = sshll.u32 [#allocation9], 4
          %s220 = int_to_ptr.vmem [resolvable:$true] %s219
          %225 = dma.hbm_to_vmem [thread:$0]  %s218, 1024, %s220, [#allocation8], 256, 256, 16
        $region16: #{tpu_custom_call.1} parent=11 // pred_fallthru
          _
        // Predicated region
        $region17: #{tpu_custom_call.1} parent=11 // pred_check
          %p226 = pneg %p145
        $region18: #{tpu_custom_call.1} parent=11 // pred_check_branch
          %228 = sbr.rel (%p226) target = $region20
        $region19: #{tpu_custom_call.1} parent=11 // pred_region
          _
        $region20: #{tpu_custom_call.1} parent=11 // pred_fallthru
          _
      $region12: #{tpu_custom_call.1} parent=5 // pred_fallthru
        _
      %p229 = scmp.lt.s32.totalorder %s25, 2
      // Predicated region
      $region21: #{tpu_custom_call.1} parent=5 // pred_check
        %p230 = pneg %p229
      $region22: #{tpu_custom_call.1} parent=5 // pred_check_branch
        %232 = sbr.rel (%p230) target = $region24
      $region23: #{tpu_custom_call.1} parent=5 // pred_region
        // Predicated region
        $region25: #{tpu_custom_call.1} parent=23 // pred_check
          %p233 = pneg %p45
        $region26: #{tpu_custom_call.1} parent=23 // pred_check_branch
          %235 = sbr.rel (%p233) target = $region28
        $region27: #{tpu_custom_call.1} parent=23 // pred_region
          %s236 = sand.u32 %s35, 1
          %s237 = scalar_lea.sflag [#allocation5], %s236
          %s238 = sand.u32 %s35, 1
          %s239 = smul.addr %s238, 8
          %s240 = scalar_lea.vmem [#allocation4], %s239
          %242 = vsyncadd %s237, 0
          %s243 = smul.addr %s25, 2
          %s244 = smul.addr %s243, 4
          %s245 = scalar_lea.hbm %s0, %s244
          %s247 = sshll.u32 %s245, 4
          %s248 = int_to_ptr.hbm [resolvable:$true] %s247
          %s249 = sshll.u32 %s240, 4
          %s250 = int_to_ptr.vmem [resolvable:$true] %s249
          %252 = dma.hbm_to_vmem [thread:$0]  %s248, 128, %s250, %s237
        $region28: #{tpu_custom_call.1} parent=23 // pred_fallthru
          _
        // Predicated region
        $region29: #{tpu_custom_call.1} parent=23 // pred_check
          %p253 = pneg %p71
        $region30: #{tpu_custom_call.1} parent=23 // pred_check_branch
          %255 = sbr.rel (%p253) target = $region32
        $region31: #{tpu_custom_call.1} parent=23 // pred_region
          %p256 = scmp.lt.s32.totalorder %s25, 1
          %s257 = scalar_select %p256, %s25, 1
          %s258 = smul.addr %s257, 2
          %s259 = smul.addr %s258, 8
          %s260 = scalar_lea.vmem %s1, %s259
        $region32: #{tpu_custom_call.1} parent=23 // pred_fallthru
          _
        // Predicated region
        $region33: #{tpu_custom_call.1} parent=23 // pred_check
          %p261 = pneg %p97
        $region34: #{tpu_custom_call.1} parent=23 // pred_check_branch
          %263 = sbr.rel (%p261) target = $region36
        $region35: #{tpu_custom_call.1} parent=23 // pred_region
          %s264 = sand.u32 %s25, 1
          %s265 = scalar_lea.sflag [#allocation8], %s264
          %s266 = sand.u32 %s87, 1
          %s267 = smul.addr %s266, 16
          %s268 = scalar_lea.vmem [#allocation7], %s267
          %270 = vsyncadd %s265, 0
          %s271 = smul.addr %s25, 2
          %s272 = smul.addr %s271, 8
          %s273 = scalar_lea.hbm %s2, %s272
          %s275 = sshll.u32 %s273, 4
          %s276 = int_to_ptr.hbm [resolvable:$true] %s275
          %s277 = sshll.u32 %s268, 4
          %s278 = int_to_ptr.vmem [resolvable:$true] %s277
          %280 = dma.hbm_to_vmem [thread:$0]  %s276, 256, %s278, %s265
        $region36: #{tpu_custom_call.1} parent=23 // pred_fallthru
          _
      $region24: #{tpu_custom_call.1} parent=5 // pred_fallthru
        _
      %p281 = scmp.le.s32.totalorder 1, %s25
      %p282 = scmp.lt.s32.totalorder %s25, 3
      %p283 = pnand %p281, %p282
      %p284 = pneg %p283
      // Predicated region
      $region37: #{tpu_custom_call.1} parent=5 // pred_check
        _
      $region38: #{tpu_custom_call.1} parent=5 // pred_check_branch
        %286 = sbr.rel (%p283) target = $region40
      $region39: #{tpu_custom_call.1} parent=5 // pred_region
        %s287 = ssub.s32 %s25, 1
        %s288 = sand.u32 %s38, 1
        %s289 = scalar_lea.sflag [#allocation5], %s288
        %s290 = sand.u32 %s38, 1
        %s291 = smul.addr %s290, 8
        %s292 = scalar_lea.vmem [#allocation4], %s291
        // Predicated region
        $region41: #{tpu_custom_call.1} parent=39 // pred_check
          %p293 = pneg %p51
        $region42: #{tpu_custom_call.1} parent=39 // pred_check_branch
          %295 = sbr.rel (%p293) target = $region44
        $region43: #{tpu_custom_call.1} parent=39 // pred_region
          %297 = dma.done %s289, 128
        $region44: #{tpu_custom_call.1} parent=39 // pred_fallthru
          _
        %s298 = sand.u32 %s30, 1
        %s299 = scalar_lea.sflag [#allocation8], %s298
        %s300 = sand.u32 %s90, 1
        %s301 = smul.addr %s300, 16
        %s302 = scalar_lea.vmem [#allocation7], %s301
        // Predicated region
        $region45: #{tpu_custom_call.1} parent=39 // pred_check
          %p303 = pneg %p103
        $region46: #{tpu_custom_call.1} parent=39 // pred_check_branch
          %305 = sbr.rel (%p303) target = $region48
        $region47: #{tpu_custom_call.1} parent=39 // pred_region
          %307 = dma.done %s299, 256
        $region48: #{tpu_custom_call.1} parent=39 // pred_fallthru
          _
        // Predicated region
        $region49: #{tpu_custom_call.1} parent=39 // pred_check
          %p308 = pneg %p124
        $region50: #{tpu_custom_call.1} parent=39 // pred_check_branch
          %310 = sbr.rel (%p308) target = $region52
        $region51: #{tpu_custom_call.1} parent=39 // pred_region
          %312 = dma.done [#allocation8], 1024
        $region52: #{tpu_custom_call.1} parent=39 // pred_fallthru
          _
        %s313 = sand.u32 %s38, 1
        %s314 = scalar_lea.sflag [#allocation5], %s313
        %s315 = sand.u32 %s38, 1
        %s316 = smul.addr %s315, 8
        %s317 = scalar_lea.vmem [#allocation4], %s316
        %p318 = pneg %p51
        %p319 = pneg %p48
        %p320 = scmp.lt.s32.totalorder %s30, 1
        %s321 = scalar_select %p320, %s30, 1
        %s322 = smul.addr %s321, 2
        %s323 = smul.addr %s322, 8
        %s324 = scalar_lea.vmem %s1, %s323
        %p325 = pneg %p77
        %p326 = pneg %p74
        %s327 = sand.u32 %s30, 1
        %s328 = scalar_lea.sflag [#allocation8], %s327
        %s329 = sand.u32 %s90, 1
        %s330 = smul.addr %s329, 16
        %s331 = scalar_lea.vmem [#allocation7], %s330
        %p332 = pneg %p103
        %p333 = pneg %p100
        %p334 = pneg %p124
        %p335 = pneg %p121
        %p336 = pneg %p145
        %p337 = pneg %p142
        %p338 = pneg %p171
        %p339 = pneg %p168
        %s340 = sand.u32 %s158, 1
        %s341 = scalar_lea.sflag [#allocation6], %s340
        %s342 = sand.u32 %s158, 1
        %s343 = smul.addr %s342, 16
        %s344 = scalar_lea.vmem [#allocation10], %s343
        %p345 = pneg %p197
        %p346 = pneg %p194
        %s347 = sand.u32 %s184, 1
        %s348 = scalar_lea.sflag [#allocation12], %s347
        %s349 = sand.u32 %s184, 1
        %s350 = smul.addr %s349, 16
        %s351 = scalar_lea.vmem [#allocation11], %s350
        %p352 = scmp.lt.s32.totalorder %s30, 1
        %s353 = scalar_select %p352, %s30, 1
        %s354 = smul.addr %s353, 2
        %s355 = smul.addr %s354, 8
        %s356 = scalar_lea.vmem %s1, %s355
        %357 = vst [vmem:[#allocation2] sm:$0xff] 0.0
        %358 = vst [vmem:[#allocation2 + $0x8] sm:$0xff] 0.0
        %359 = vst [vmem:[#allocation2 + $0x10] sm:$0xff] 0.0
        %360 = vst [vmem:[#allocation2 + $0x18] sm:$0xff] 0.0
        %361 = vst [vmem:[#allocation2 + $0x20] sm:$0xff] 0.0
        %362 = vst [vmem:[#allocation2 + $0x28] sm:$0xff] 0.0
        %363 = vst [vmem:[#allocation2 + $0x30] sm:$0xff] 0.0
        %364 = vst [vmem:[#allocation2 + $0x38] sm:$0xff] 0.0
        %v365 = vld [vmem:[%s356] sm:$0xff]
        %v366 = vld [vmem:[%s356 + $0x8] sm:$0xff]
        %367 = vst [vmem:[#allocation2 + $0x8] sm:$0xff] %v365
        %368 = vst [vmem:[#allocation2 + $0x10] sm:$0xff] %v366
        %v369 = vld [vmem:[%s292] sm:$0xff]
        %371 = vst [vmem:[#allocation1] ss:$2 sm:$0xff] %v369
        %v372 = vld.sshfl [vmem:[#allocation1] sm:$0xff pattern:$0x75316420]
        %v373 = vld.sshfl [vmem:[#allocation1 + $0x8] sm:$0xff pattern:$0x75316420]
        %376 = vst [vmem:[#allocation2 + $0x28] sm:$0xf] %v372
        %377 = vst [vmem:[#allocation2 + $0x30] sm:$0xf] %v373
        %v378 = vlaneseq
        %v379 = vand.u32 %v378, 127
        %v380 = vadd.s32 %v379, 128
        %vm381 = vcmp.lt.s32.totalorder %v379, 0
        %v382 = vsub.s32 0, %v379
        %v383 = vsel %vm381, %v382, %v379
        %v384 = vshrl.u32 %v383, 4
        %v385 = vand.u32 %v383, 15
        %v386 = vsub.s32 0, %v385
        %v387 = vsel %vm381, %v386, %v385
        %vm388 = vcmp.lt.s32.totalorder %v380, 0
        %v389 = vsub.s32 0, %v380
        %v390 = vsel %vm388, %v389, %v380
        %v391 = vshrl.u32 %v390, 4
        %v392 = vand.u32 %v390, 15
        %v393 = vsub.s32 0, %v392
        %v394 = vsel %vm388, %v393, %v392
        %vm395 = vcmp.ne.s32.totalorder %v387, 0
        %vm396 = vcmp.ne.s32.totalorder %v394, 0
        %vm397 = vcmp.lt.s32.totalorder %v387, 0
        %vm398 = vcmp.lt.s32.totalorder %v394, 0
        %vm399 = vmand %vm397, %vm395
        %vm400 = vmand %vm398, %vm396
        %v401 = vadd.s32 %v387, 16
        %v402 = vadd.s32 %v394, 16
        %v403 = vsel %vm399, %v401, %v387
        %v404 = vsel %vm400, %v402, %v394
        %v405 = vadd.s32 %v403, 4294967295
        %v406 = vadd.s32 %v404, 4294967295
        %vm407 = vcmp.ge.s32.totalorder %v405, 0
        %vm408 = vcmp.ge.s32.totalorder %v406, 0
        %vm409 = vcmp.lt.s32.totalorder %v405, 16
        %vm410 = vcmp.lt.s32.totalorder %v406, 16
        %vm411 = vmand %vm407, %vm409
        %vm412 = vmand %vm408, %vm410
        %v413 = vadd.s32 %v403, 1
        %v414 = vadd.s32 %v404, 1
        %vm415 = vcmp.ge.s32.totalorder %v413, 0
        %vm416 = vcmp.ge.s32.totalorder %v414, 0
        %vm417 = vcmp.lt.s32.totalorder %v413, 16
        %vm418 = vcmp.lt.s32.totalorder %v414, 16
        %vm419 = vmand %vm415, %vm417
        %vm420 = vmand %vm416, %vm418
        %v421 = vld [vmem:[#allocation2] sm:$0xff]
        %v422 = vld [vmem:[#allocation2 + $0x8] sm:$0xff]
        %v423 = vld [vmem:[#allocation2 + $0x10] sm:$0xff]
        %v424 = vld [vmem:[#allocation2 + $0x20] sm:$0xff]
        %v425 = vld [vmem:[#allocation2 + $0x28] sm:$0xff]
        %v426 = vld [vmem:[#allocation2 + $0x30] sm:$0xff]
        %433 = vrot.lane.b32.xlu0 %v421, 17
        %v434 = vpop.permute.xlu0 %433
        %435 = vrot.lane.b32.xlu0 %v422, 17
        %v436 = vpop.permute.xlu0 %435
        %437 = vrot.lane.b32.xlu0 %v423, 17
        %v438 = vpop.permute.xlu0 %437
        %439 = vrot.lane.b32.xlu0 %v424, 17
        %v440 = vpop.permute.xlu0 %439
        %441 = vrot.lane.b32.xlu0 %v425, 17
        %v442 = vpop.permute.xlu0 %441
        %443 = vrot.lane.b32.xlu0 %v426, 17
        %v444 = vpop.permute.xlu0 %443
        %vm445 = vcmask 138240
        %v446 = vsel %vm445, %v434, %v436
        %v447 = vsel %vm445, %v436, %v438
        %v448 = vsel %vm445, %v440, %v442
        %v449 = vsel %vm445, %v442, %v444
        %v454 = vsel %vm411, %v446, 0.0
        %v455 = vsel %vm412, %v447, 0.0
        %v456 = vsel %vm411, %v448, 0.0
        %v457 = vsel %vm412, %v449, 0.0
        %458 = vst [vmem:[#allocation3] sm:$0xff] %v454
        %459 = vst [vmem:[#allocation3 + $0x8] sm:$0xff] %v455
        %460 = vst [vmem:[#allocation3 + $0x10] sm:$0xff] %v456
        %461 = vst [vmem:[#allocation3 + $0x18] sm:$0xff] %v457
        %v462 = vld [vmem:[#allocation2] sm:$0xff]
        %v463 = vld [vmem:[#allocation2 + $0x8] sm:$0xff]
        %v464 = vld [vmem:[#allocation2 + $0x10] sm:$0xff]
        %v465 = vld [vmem:[#allocation2 + $0x20] sm:$0xff]
        %v466 = vld [vmem:[#allocation2 + $0x28] sm:$0xff]
        %v467 = vld [vmem:[#allocation2 + $0x30] sm:$0xff]
        %474 = vrot.lane.b32.xlu0 %v462, 16
        %v475 = vpop.permute.xlu0 %474
        %476 = vrot.lane.b32.xlu0 %v463, 16
        %v477 = vpop.permute.xlu0 %476
        %478 = vrot.lane.b32.xlu0 %v464, 16
        %v479 = vpop.permute.xlu0 %478
        %480 = vrot.lane.b32.xlu0 %v465, 16
        %v481 = vpop.permute.xlu0 %480
        %482 = vrot.lane.b32.xlu0 %v466, 16
        %v483 = vpop.permute.xlu0 %482
        %484 = vrot.lane.b32.xlu0 %v467, 16
        %v485 = vpop.permute.xlu0 %484
        %vm486 = vcmask 130048
        %v487 = vsel %vm486, %v475, %v477
        %v488 = vsel %vm486, %v477, %v479
        %v489 = vsel %vm486, %v481, %v483
        %v490 = vsel %vm486, %v483, %v485
        %495 = vst [vmem:[#allocation3 + $0x20] sm:$0xff] %v487
        %496 = vst [vmem:[#allocation3 + $0x28] sm:$0xff] %v488
        %497 = vst [vmem:[#allocation3 + $0x30] sm:$0xff] %v489
        %498 = vst [vmem:[#allocation3 + $0x38] sm:$0xff] %v490
        %v499 = vld [vmem:[#allocation2] sm:$0xff]
        %v500 = vld [vmem:[#allocation2 + $0x8] sm:$0xff]
        %v501 = vld [vmem:[#allocation2 + $0x10] sm:$0xff]
        %v502 = vld [vmem:[#allocation2 + $0x20] sm:$0xff]
        %v503 = vld [vmem:[#allocation2 + $0x28] sm:$0xff]
        %v504 = vld [vmem:[#allocation2 + $0x30] sm:$0xff]
        %511 = vrot.lane.b32.xlu0 %v499, 15
        %v512 = vpop.permute.xlu0 %511
        %513 = vrot.lane.b32.xlu0 %v500, 15
        %v514 = vpop.permute.xlu0 %513
        %515 = vrot.lane.b32.xlu0 %v501, 15
        %v516 = vpop.permute.xlu0 %515
        %517 = vrot.lane.b32.xlu0 %v502, 15
        %v518 = vpop.permute.xlu0 %517
        %519 = vrot.lane.b32.xlu0 %v503, 15
        %v520 = vpop.permute.xlu0 %519
        %521 = vrot.lane.b32.xlu0 %v504, 15
        %v522 = vpop.permute.xlu0 %521
        %vm523 = vcmask 121856
        %v524 = vsel %vm523, %v512, %v514
        %v525 = vsel %vm523, %v514, %v516
        %v526 = vsel %vm523, %v518, %v520
        %v527 = vsel %vm523, %v520, %v522
        %v532 = vsel %vm419, %v524, 0.0
        %v533 = vsel %vm420, %v525, 0.0
        %v534 = vsel %vm419, %v526, 0.0
        %v535 = vsel %vm420, %v527, 0.0
        %536 = vst [vmem:[#allocation3 + $0x40] sm:$0xff] %v532
        %537 = vst [vmem:[#allocation3 + $0x48] sm:$0xff] %v533
        %538 = vst [vmem:[#allocation3 + $0x50] sm:$0xff] %v534
        %539 = vst [vmem:[#allocation3 + $0x58] sm:$0xff] %v535
        %v540 = vld [vmem:[#allocation2] sm:$0xff]
        %v541 = vld [vmem:[#allocation2 + $0x8] sm:$0xff]
        %v542 = vld [vmem:[#allocation2 + $0x10] sm:$0xff]
        %v543 = vld [vmem:[#allocation2 + $0x20] sm:$0xff]
        %v544 = vld [vmem:[#allocation2 + $0x28] sm:$0xff]
        %v545 = vld [vmem:[#allocation2 + $0x30] sm:$0xff]
        %552 = vrot.lane.b32.xlu0 %v540, 1
        %v553 = vpop.permute.xlu0 %552
        %554 = vrot.lane.b32.xlu0 %v541, 1
        %v555 = vpop.permute.xlu0 %554
        %556 = vrot.lane.b32.xlu0 %v542, 1
        %v557 = vpop.permute.xlu0 %556
        %558 = vrot.lane.b32.xlu0 %v543, 1
        %v559 = vpop.permute.xlu0 %558
        %560 = vrot.lane.b32.xlu0 %v544, 1
        %v561 = vpop.permute.xlu0 %560
        %562 = vrot.lane.b32.xlu0 %v545, 1
        %v563 = vpop.permute.xlu0 %562
        %vm564 = vcmask 7168
        %v565 = vsel %vm564, %v553, %v555
        %v566 = vsel %vm564, %v555, %v557
        %v567 = vsel %vm564, %v559, %v561
        %v568 = vsel %vm564, %v561, %v563
        %v573 = vsel %vm411, %v565, 0.0
        %v574 = vsel %vm412, %v566, 0.0
        %v575 = vsel %vm411, %v567, 0.0
        %v576 = vsel %vm412, %v568, 0.0
        %577 = vst [vmem:[#allocation3 + $0x60] sm:$0xff] %v573
        %578 = vst [vmem:[#allocation3 + $0x68] sm:$0xff] %v574
        %579 = vst [vmem:[#allocation3 + $0x70] sm:$0xff] %v575
        %580 = vst [vmem:[#allocation3 + $0x78] sm:$0xff] %v576
        %v581 = vld [vmem:[#allocation2 + $0x8] sm:$0xff]
        %v582 = vld [vmem:[#allocation2 + $0x10] sm:$0xff]
        %v583 = vld [vmem:[#allocation2 + $0x28] sm:$0xff]
        %v584 = vld [vmem:[#allocation2 + $0x30] sm:$0xff]
        %585 = vst [vmem:[#allocation3 + $0x80] sm:$0xff] %v581
        %586 = vst [vmem:[#allocation3 + $0x88] sm:$0xff] %v582
        %587 = vst [vmem:[#allocation3 + $0x90] sm:$0xff] %v583
        %588 = vst [vmem:[#allocation3 + $0x98] sm:$0xff] %v584
        %v589 = vld [vmem:[#allocation2 + $0x8] sm:$0xff]
        %v590 = vld [vmem:[#allocation2 + $0x10] sm:$0xff]
        %v591 = vld [vmem:[#allocation2 + $0x18] sm:$0xff]
        %v592 = vld [vmem:[#allocation2 + $0x28] sm:$0xff]
        %v593 = vld [vmem:[#allocation2 + $0x30] sm:$0xff]
        %v594 = vld [vmem:[#allocation2 + $0x38] sm:$0xff]
        %601 = vrot.lane.b32.xlu0 %v589, 127
        %v602 = vpop.permute.xlu0 %601
        %603 = vrot.lane.b32.xlu0 %v590, 127
        %v604 = vpop.permute.xlu0 %603
        %605 = vrot.lane.b32.xlu0 %v591, 127
        %v606 = vpop.permute.xlu0 %605
        %607 = vrot.lane.b32.xlu0 %v592, 127
        %v608 = vpop.permute.xlu0 %607
        %609 = vrot.lane.b32.xlu0 %v593, 127
        %v610 = vpop.permute.xlu0 %609
        %611 = vrot.lane.b32.xlu0 %v594, 127
        %v612 = vpop.permute.xlu0 %611
        %vm613 = vcmask 1039360
        %v614 = vsel %vm613, %v602, %v604
        %v615 = vsel %vm613, %v604, %v606
        %v616 = vsel %vm613, %v608, %v610
        %v617 = vsel %vm613, %v610, %v612
        %v622 = vsel %vm419, %v614, 0.0
        %v623 = vsel %vm420, %v615, 0.0
        %v624 = vsel %vm419, %v616, 0.0
        %v625 = vsel %vm420, %v617, 0.0
        %626 = vst [vmem:[#allocation3 + $0xa0] sm:$0xff] %v622
        %627 = vst [vmem:[#allocation3 + $0xa8] sm:$0xff] %v623
        %628 = vst [vmem:[#allocation3 + $0xb0] sm:$0xff] %v624
        %629 = vst [vmem:[#allocation3 + $0xb8] sm:$0xff] %v625
        %v630 = vld [vmem:[#allocation2 + $0x8] sm:$0xff]
        %v631 = vld [vmem:[#allocation2 + $0x10] sm:$0xff]
        %v632 = vld [vmem:[#allocation2 + $0x18] sm:$0xff]
        %v633 = vld [vmem:[#allocation2 + $0x28] sm:$0xff]
        %v634 = vld [vmem:[#allocation2 + $0x30] sm:$0xff]
        %v635 = vld [vmem:[#allocation2 + $0x38] sm:$0xff]
        %642 = vrot.lane.b32.xlu0 %v630, 113
        %v643 = vpop.permute.xlu0 %642
        %644 = vrot.lane.b32.xlu0 %v631, 113
        %v645 = vpop.permute.xlu0 %644
        %646 = vrot.lane.b32.xlu0 %v632, 113
        %v647 = vpop.permute.xlu0 %646
        %648 = vrot.lane.b32.xlu0 %v633, 113
        %v649 = vpop.permute.xlu0 %648
        %650 = vrot.lane.b32.xlu0 %v634, 113
        %v651 = vpop.permute.xlu0 %650
        %652 = vrot.lane.b32.xlu0 %v635, 113
        %v653 = vpop.permute.xlu0 %652
        %vm654 = vcmask 924672
        %v655 = vsel %vm654, %v643, %v645
        %v656 = vsel %vm654, %v645, %v647
        %v657 = vsel %vm654, %v649, %v651
        %v658 = vsel %vm654, %v651, %v653
        %v663 = vsel %vm411, %v655, 0.0
        %v664 = vsel %vm412, %v656, 0.0
        %v665 = vsel %vm411, %v657, 0.0
        %v666 = vsel %vm412, %v658, 0.0
        %667 = vst [vmem:[#allocation3 + $0xc0] sm:$0xff] %v663
        %668 = vst [vmem:[#allocation3 + $0xc8] sm:$0xff] %v664
        %669 = vst [vmem:[#allocation3 + $0xd0] sm:$0xff] %v665
        %670 = vst [vmem:[#allocation3 + $0xd8] sm:$0xff] %v666
        %v671 = vld [vmem:[#allocation2 + $0x8] sm:$0xff]
        %v672 = vld [vmem:[#allocation2 + $0x10] sm:$0xff]
        %v673 = vld [vmem:[#allocation2 + $0x18] sm:$0xff]
        %v674 = vld [vmem:[#allocation2 + $0x28] sm:$0xff]
        %v675 = vld [vmem:[#allocation2 + $0x30] sm:$0xff]
        %v676 = vld [vmem:[#allocation2 + $0x38] sm:$0xff]
        %683 = vrot.lane.b32.xlu0 %v671, 112
        %v684 = vpop.permute.xlu0 %683
        %685 = vrot.lane.b32.xlu0 %v672, 112
        %v686 = vpop.permute.xlu0 %685
        %687 = vrot.lane.b32.xlu0 %v673, 112
        %v688 = vpop.permute.xlu0 %687
        %689 = vrot.lane.b32.xlu0 %v674, 112
        %v690 = vpop.permute.xlu0 %689
        %691 = vrot.lane.b32.xlu0 %v675, 112
        %v692 = vpop.permute.xlu0 %691
        %693 = vrot.lane.b32.xlu0 %v676, 112
        %v694 = vpop.permute.xlu0 %693
        %vm695 = vcmask 916480
        %v696 = vsel %vm695, %v684, %v686
        %v697 = vsel %vm695, %v686, %v688
        %v698 = vsel %vm695, %v690, %v692
        %v699 = vsel %vm695, %v692, %v694
        %704 = vst [vmem:[#allocation3 + $0xe0] sm:$0xff] %v696
        %705 = vst [vmem:[#allocation3 + $0xe8] sm:$0xff] %v697
        %706 = vst [vmem:[#allocation3 + $0xf0] sm:$0xff] %v698
        %707 = vst [vmem:[#allocation3 + $0xf8] sm:$0xff] %v699
        %v708 = vld [vmem:[#allocation2 + $0x8] sm:$0xff]
        %v709 = vld [vmem:[#allocation2 + $0x10] sm:$0xff]
        %v710 = vld [vmem:[#allocation2 + $0x18] sm:$0xff]
        %v711 = vld [vmem:[#allocation2 + $0x28] sm:$0xff]
        %v712 = vld [vmem:[#allocation2 + $0x30] sm:$0xff]
        %v713 = vld [vmem:[#allocation2 + $0x38] sm:$0xff]
        %720 = vrot.lane.b32.xlu0 %v708, 111
        %v721 = vpop.permute.xlu0 %720
        %722 = vrot.lane.b32.xlu0 %v709, 111
        %v723 = vpop.permute.xlu0 %722
        %724 = vrot.lane.b32.xlu0 %v710, 111
        %v725 = vpop.permute.xlu0 %724
        %726 = vrot.lane.b32.xlu0 %v711, 111
        %v727 = vpop.permute.xlu0 %726
        %728 = vrot.lane.b32.xlu0 %v712, 111
        %v729 = vpop.permute.xlu0 %728
        %730 = vrot.lane.b32.xlu0 %v713, 111
        %v731 = vpop.permute.xlu0 %730
        %vm732 = vcmask 908288
        %v733 = vsel %vm732, %v721, %v723
        %v734 = vsel %vm732, %v723, %v725
        %v735 = vsel %vm732, %v727, %v729
        %v736 = vsel %vm732, %v729, %v731
        %v741 = vsel %vm419, %v733, 0.0
        %v742 = vsel %vm420, %v734, 0.0
        %v743 = vsel %vm419, %v735, 0.0
        %v744 = vsel %vm420, %v736, 0.0
        %745 = vst [vmem:[#allocation3 + $0x100] sm:$0xff] %v741
        %746 = vst [vmem:[#allocation3 + $0x108] sm:$0xff] %v742
        %747 = vst [vmem:[#allocation3 + $0x110] sm:$0xff] %v743
        %748 = vst [vmem:[#allocation3 + $0x118] sm:$0xff] %v744
        %v749 = vld [vmem:[#allocation9] sm:$0xff]
        %v750 = vld [vmem:[#allocation9 + $0x8] sm:$0xff]
        %v751 = vld [vmem:[#allocation9 + $0x10] sm:$0xff]
        %v752 = vld [vmem:[#allocation9 + $0x18] sm:$0xff]
        %v753 = vld [vmem:[#allocation9 + $0x20] sm:$0xff]
        %v754 = vld [vmem:[#allocation9 + $0x28] sm:$0xff]
        %v755 = vld [vmem:[#allocation9 + $0x30] sm:$0xff]
        %v756 = vld [vmem:[#allocation9 + $0x38] sm:$0xff]
        %v757 = vld [vmem:[#allocation3] sm:$0xff]
        %v758 = vld [vmem:[#allocation3 + $0x8] sm:$0xff]
        %v759 = vld [vmem:[#allocation3 + $0x10] sm:$0xff]
        %v760 = vld [vmem:[#allocation3 + $0x18] sm:$0xff]
        %v761 = vld [vmem:[#allocation3 + $0x20] sm:$0xff]
        %v762 = vld [vmem:[#allocation3 + $0x28] sm:$0xff]
        %v763 = vld [vmem:[#allocation3 + $0x30] sm:$0xff]
        %v764 = vld [vmem:[#allocation3 + $0x38] sm:$0xff]
        %v765 = vld [vmem:[#allocation3 + $0x40] sm:$0xff]
        %v766 = vld [vmem:[#allocation3 + $0x48] sm:$0xff]
        %v767 = vld [vmem:[#allocation3 + $0x50] sm:$0xff]
        %v768 = vld [vmem:[#allocation3 + $0x58] sm:$0xff]
        %v769 = vld [vmem:[#allocation3 + $0x60] sm:$0xff]
        %v770 = vld [vmem:[#allocation3 + $0x68] sm:$0xff]
        %v771 = vld [vmem:[#allocation3 + $0x70] sm:$0xff]
        %v772 = vld [vmem:[#allocation3 + $0x78] sm:$0xff]
        %v773 = vld [vmem:[#allocation3 + $0x80] sm:$0xff]
        %v774 = vld [vmem:[#allocation3 + $0x88] sm:$0xff]
        %v775 = vld [vmem:[#allocation3 + $0x90] sm:$0xff]
        %v776 = vld [vmem:[#allocation3 + $0x98] sm:$0xff]
        %v777 = vld [vmem:[#allocation3 + $0xa0] sm:$0xff]
        %v778 = vld [vmem:[#allocation3 + $0xa8] sm:$0xff]
        %v779 = vld [vmem:[#allocation3 + $0xb0] sm:$0xff]
        %v780 = vld [vmem:[#allocation3 + $0xb8] sm:$0xff]
        %v781 = vld [vmem:[#allocation3 + $0xc0] sm:$0xff]
        %v782 = vld [vmem:[#allocation3 + $0xc8] sm:$0xff]
        %v783 = vld [vmem:[#allocation3 + $0xd0] sm:$0xff]
        %v784 = vld [vmem:[#allocation3 + $0xd8] sm:$0xff]
        %v785 = vld [vmem:[#allocation3 + $0xe0] sm:$0xff]
        %v786 = vld [vmem:[#allocation3 + $0xe8] sm:$0xff]
        %v787 = vld [vmem:[#allocation3 + $0xf0] sm:$0xff]
        %v788 = vld [vmem:[#allocation3 + $0xf8] sm:$0xff]
        %v789 = vld [vmem:[#allocation3 + $0x100] sm:$0xff]
        %v790 = vld [vmem:[#allocation3 + $0x108] sm:$0xff]
        %v791 = vld [vmem:[#allocation3 + $0x110] sm:$0xff]
        %v792 = vld [vmem:[#allocation3 + $0x118] sm:$0xff]
        %v793 = vld [vmem:[%s4] sm:$0xff]
        %v794 = vld [vmem:[%s4 + $0x8] sm:$0xff]
        %v795 = vld [vmem:[%s4 + $0x10] sm:$0xff]
        %v796 = vld [vmem:[%s4 + $0x18] sm:$0xff]
        %798 = vset.pattern.permute.xlu0 0
        %799 = vperm.xlu0 %798, %v793
        %v800 = vpop.permute.xlu0 %799
        %803 = vset.pattern.permute.xlu0 0
        %804 = vperm.xlu0 %803, %v794
        %v805 = vpop.permute.xlu0 %804
        %808 = vset.pattern.permute.xlu0 0
        %809 = vperm.xlu0 %808, %v795
        %v810 = vpop.permute.xlu0 %809
        %813 = vset.pattern.permute.xlu0 0
        %814 = vperm.xlu0 %813, %v796
        %v815 = vpop.permute.xlu0 %814
        %v818 = vsel %vm486, %v750, 0
        %v821 = vsel %vm486, %v752, 0
        %v824 = vsel %vm486, %v754, 0
        %v827 = vsel %vm486, %v756, 0
        %829 = vmatpush.msra.mxu0 %v787
        %830 = vmatpush.msra.mxu0 %v785
        %831 = vmatpush.msra.mxu0 %v783
        %832 = vmatpush.msra.mxu0 %v781
        %833 = vmatpush.msra.mxu0 %v779
        %834 = vmatpush.msra.mxu0 %v777
        %835 = vmatpush.msra.mxu0 %v775
        %836 = vmatpush.msra.mxu0 %v773
        %837 = vmatpush.msra.mxu0 %v771
        %838 = vmatpush.msra.mxu0 %v769
        %839 = vmatpush.msra.mxu0 %v767
        %840 = vmatpush.msra.mxu0 %v765
        %841 = vmatpush.msra.mxu0 %v763
        %842 = vmatpush.msra.mxu0 %v761
        %843 = vmatpush.msra.mxu0 %v759
        %844 = vmatpush.msra.mxu0 %v757
        %845 = vmatmul.f32.gmra.mxu0 %v749
        %v846 = vpop.f32.mrf.mxu0
        %v847 = vadd.f32 %v800, %v846
        %848 = vmatmul.f32.gmra.mxu0 %v751
        %v849 = vpop.f32.mrf.mxu0
        %v850 = vadd.f32 %v805, %v849
        %851 = vmatmul.f32.gmra.mxu0 %v753
        %v852 = vpop.f32.mrf.mxu0
        %v853 = vadd.f32 %v810, %v852
        %854 = vmatmul.f32.gmra.mxu0 %v755
        %v855 = vpop.f32.mrf.mxu0
        %v856 = vadd.f32 %v815, %v855
        %857 = vdwg.mxu0
        %858 = vmatpush.msra.mxu0 0.0
        %859 = vmatpush.msra.mxu0 0.0
        %860 = vmatpush.msra.mxu0 0.0
        %861 = vmatpush.msra.mxu0 0.0
        %862 = vmatpush.msra.mxu0 0.0
        %863 = vmatpush.msra.mxu0 0.0
        %864 = vmatpush.msra.mxu0 0.0
        %865 = vmatpush.msra.mxu0 0.0
        %866 = vmatpush.msra.mxu0 0.0
        %867 = vmatpush.msra.mxu0 0.0
        %868 = vmatpush.msra.mxu0 0.0
        %869 = vmatpush.msra.mxu0 0.0
        %870 = vmatpush.msra.mxu0 0.0
        %871 = vmatpush.msra.mxu0 0.0
        %872 = vmatpush.msra.mxu0 %v791
        %873 = vmatpush.msra.mxu0 %v789
        %874 = vmatmul.f32.gmra.mxu0 %v818
        %v875 = vpop.f32.mrf.mxu0
        %v876 = vadd.f32 %v847, %v875
        %877 = vmatmul.f32.gmra.mxu0 %v821
        %v878 = vpop.f32.mrf.mxu0
        %v879 = vadd.f32 %v850, %v878
        %880 = vmatmul.f32.gmra.mxu0 %v824
        %v881 = vpop.f32.mrf.mxu0
        %v882 = vadd.f32 %v853, %v881
        %883 = vmatmul.f32.gmra.mxu0 %v827
        %v884 = vpop.f32.mrf.mxu0
        %v885 = vadd.f32 %v856, %v884
        %886 = vdwg.mxu0
        %887 = vmatpush.msra.mxu0 %v788
        %888 = vmatpush.msra.mxu0 %v786
        %889 = vmatpush.msra.mxu0 %v784
        %890 = vmatpush.msra.mxu0 %v782
        %891 = vmatpush.msra.mxu0 %v780
        %892 = vmatpush.msra.mxu0 %v778
        %893 = vmatpush.msra.mxu0 %v776
        %894 = vmatpush.msra.mxu0 %v774
        %895 = vmatpush.msra.mxu0 %v772
        %896 = vmatpush.msra.mxu0 %v770
        %897 = vmatpush.msra.mxu0 %v768
        %898 = vmatpush.msra.mxu0 %v766
        %899 = vmatpush.msra.mxu0 %v764
        %900 = vmatpush.msra.mxu0 %v762
        %901 = vmatpush.msra.mxu0 %v760
        %902 = vmatpush.msra.mxu0 %v758
        %903 = vmatmul.f32.gmra.mxu0 %v749
        %v904 = vpop.f32.mrf.mxu0
        %v905 = vadd.f32 %v800, %v904
        %906 = vmatmul.f32.gmra.mxu0 %v751
        %v907 = vpop.f32.mrf.mxu0
        %v908 = vadd.f32 %v805, %v907
        %909 = vmatmul.f32.gmra.mxu0 %v753
        %v910 = vpop.f32.mrf.mxu0
        %v911 = vadd.f32 %v810, %v910
        %912 = vmatmul.f32.gmra.mxu0 %v755
        %v913 = vpop.f32.mrf.mxu0
        %v914 = vadd.f32 %v815, %v913
        %915 = vdwg.mxu0
        %916 = vmatpush.msra.mxu0 0.0
        %917 = vmatpush.msra.mxu0 0.0
        %918 = vmatpush.msra.mxu0 0.0
        %919 = vmatpush.msra.mxu0 0.0
        %920 = vmatpush.msra.mxu0 0.0
        %921 = vmatpush.msra.mxu0 0.0
        %922 = vmatpush.msra.mxu0 0.0
        %923 = vmatpush.msra.mxu0 0.0
        %924 = vmatpush.msra.mxu0 0.0
        %925 = vmatpush.msra.mxu0 0.0
        %926 = vmatpush.msra.mxu0 0.0
        %927 = vmatpush.msra.mxu0 0.0
        %928 = vmatpush.msra.mxu0 0.0
        %929 = vmatpush.msra.mxu0 0.0
        %930 = vmatpush.msra.mxu0 %v792
        %931 = vmatpush.msra.mxu0 %v790
        %932 = vmatmul.f32.gmra.mxu0 %v818
        %v933 = vpop.f32.mrf.mxu0
        %v934 = vadd.f32 %v905, %v933
        %935 = vmatmul.f32.gmra.mxu0 %v821
        %v936 = vpop.f32.mrf.mxu0
        %v937 = vadd.f32 %v908, %v936
        %938 = vmatmul.f32.gmra.mxu0 %v824
        %v939 = vpop.f32.mrf.mxu0
        %v940 = vadd.f32 %v911, %v939
        %941 = vmatmul.f32.gmra.mxu0 %v827
        %v942 = vpop.f32.mrf.mxu0
        %v943 = vadd.f32 %v914, %v942
        %944 = vdwg.mxu0
        %v945 = vxor.u32 %v876, 2147483648
        %v946 = vxor.u32 %v934, 2147483648
        %v947 = vmul.f32 %v945, 1.442695
        %v948 = vpow.pop %v947
        %v949 = vmul.f32 %v946, 1.442695
        %v950 = vpow.pop %v949
        %v951 = vadd.f32 %v948, 1.0
        %v952 = vadd.f32 %v950, 1.0
        %v953 = vrcp.pop %v951
        %v954 = vmul.f32 %v951, %v953
        %v955 = vsub.f32 1.0, %v954
        %v956 = vmul.f32 %v953, %v955
        %v957 = vadd.f32 %v953, %v956
        %vm958 = vweird.f32 %v951
        %vm959 = vweird.f32 %v953
        %vm960 = vmor %vm958, %vm959
        %v961 = vsel %vm960, %v953, %v957
        %v962 = vand.u32 2147483647, %v951
        %vm963 = vcmp.eq.f32.partialorder %v962, 8.507059e+37
        %v964 = vand.u32 %v951, 2147483648
        %v965 = vor.u32 1.1754944e-38, %v964
        %v966 = vsel %vm963, %v965, %v961
        %v967 = vmul.f32 1.0, %v966
        %v968 = vrcp.pop %v952
        %v969 = vmul.f32 %v952, %v968
        %v970 = vsub.f32 1.0, %v969
        %v971 = vmul.f32 %v968, %v970
        %v972 = vadd.f32 %v968, %v971
        %vm973 = vweird.f32 %v952
        %vm974 = vweird.f32 %v968
        %vm975 = vmor %vm973, %vm974
        %v976 = vsel %vm975, %v968, %v972
        %v977 = vand.u32 2147483647, %v952
        %vm978 = vcmp.eq.f32.partialorder %v977, 8.507059e+37
        %v979 = vand.u32 %v952, 2147483648
        %v980 = vor.u32 1.1754944e-38, %v979
        %v981 = vsel %vm978, %v980, %v976
        %v982 = vmul.f32 1.0, %v981
        %v983 = vxor.u32 %v879, 2147483648
        %v984 = vxor.u32 %v937, 2147483648
        %v985 = vmul.f32 %v983, 1.442695
        %v986 = vpow.pop %v985
        %v987 = vmul.f32 %v984, 1.442695
        %v988 = vpow.pop %v987
        %v989 = vadd.f32 %v986, 1.0
        %v990 = vadd.f32 %v988, 1.0
        %v991 = vrcp.pop %v989
        %v992 = vmul.f32 %v989, %v991
        %v993 = vsub.f32 1.0, %v992
        %v994 = vmul.f32 %v991, %v993
        %v995 = vadd.f32 %v991, %v994
        %vm996 = vweird.f32 %v989
        %vm997 = vweird.f32 %v991
        %vm998 = vmor %vm996, %vm997
        %v999 = vsel %vm998, %v991, %v995
        %v1000 = vand.u32 2147483647, %v989
        %vm1001 = vcmp.eq.f32.partialorder %v1000, 8.507059e+37
        %v1002 = vand.u32 %v989, 2147483648
        %v1003 = vor.u32 1.1754944e-38, %v1002
        %v1004 = vsel %vm1001, %v1003, %v999
        %v1005 = vmul.f32 1.0, %v1004
        %v1006 = vrcp.pop %v990
        %v1007 = vmul.f32 %v990, %v1006
        %v1008 = vsub.f32 1.0, %v1007
        %v1009 = vmul.f32 %v1006, %v1008
        %v1010 = vadd.f32 %v1006, %v1009
        %vm1011 = vweird.f32 %v990
        %vm1012 = vweird.f32 %v1006
        %vm1013 = vmor %vm1011, %vm1012
        %v1014 = vsel %vm1013, %v1006, %v1010
        %v1015 = vand.u32 2147483647, %v990
        %vm1016 = vcmp.eq.f32.partialorder %v1015, 8.507059e+37
        %v1017 = vand.u32 %v990, 2147483648
        %v1018 = vor.u32 1.1754944e-38, %v1017
        %v1019 = vsel %vm1016, %v1018, %v1014
        %v1020 = vmul.f32 1.0, %v1019
        %v1021 = vxor.u32 %v882, 2147483648
        %v1022 = vxor.u32 %v940, 2147483648
        %v1023 = vmul.f32 %v1021, 1.442695
        %v1024 = vpow.pop %v1023
        %v1025 = vmul.f32 %v1022, 1.442695
        %v1026 = vpow.pop %v1025
        %v1027 = vadd.f32 %v1024, 1.0
        %v1028 = vadd.f32 %v1026, 1.0
        %v1029 = vrcp.pop %v1027
        %v1030 = vmul.f32 %v1027, %v1029
        %v1031 = vsub.f32 1.0, %v1030
        %v1032 = vmul.f32 %v1029, %v1031
        %v1033 = vadd.f32 %v1029, %v1032
        %vm1034 = vweird.f32 %v1027
        %vm1035 = vweird.f32 %v1029
        %vm1036 = vmor %vm1034, %vm1035
        %v1037 = vsel %vm1036, %v1029, %v1033
        %v1038 = vand.u32 2147483647, %v1027
        %vm1039 = vcmp.eq.f32.partialorder %v1038, 8.507059e+37
        %v1040 = vand.u32 %v1027, 2147483648
        %v1041 = vor.u32 1.1754944e-38, %v1040
        %v1042 = vsel %vm1039, %v1041, %v1037
        %v1043 = vmul.f32 1.0, %v1042
        %v1044 = vrcp.pop %v1028
        %v1045 = vmul.f32 %v1028, %v1044
        %v1046 = vsub.f32 1.0, %v1045
        %v1047 = vmul.f32 %v1044, %v1046
        %v1048 = vadd.f32 %v1044, %v1047
        %vm1049 = vweird.f32 %v1028
        %vm1050 = vweird.f32 %v1044
        %vm1051 = vmor %vm1049, %vm1050
        %v1052 = vsel %vm1051, %v1044, %v1048
        %v1053 = vand.u32 2147483647, %v1028
        %vm1054 = vcmp.eq.f32.partialorder %v1053, 8.507059e+37
        %v1055 = vand.u32 %v1028, 2147483648
        %v1056 = vor.u32 1.1754944e-38, %v1055
        %v1057 = vsel %vm1054, %v1056, %v1052
        %v1058 = vmul.f32 1.0, %v1057
        %v1059 = vtanh.pop %v885
        %v1060 = vtanh.pop %v943
        %v1061 = vld [vmem:[%s302] sm:$0xff]
        %v1062 = vld [vmem:[%s302 + $0x8] sm:$0xff]
        %v1063 = vmul.f32 %v1005, %v1061
        %v1064 = vmul.f32 %v1020, %v1062
        %v1065 = vmul.f32 %v967, %v1059
        %v1066 = vmul.f32 %v982, %v1060
        %v1067 = vadd.f32 %v1063, %v1065
        %v1068 = vadd.f32 %v1064, %v1066
        %v1069 = vtanh.pop %v1067
        %v1070 = vtanh.pop %v1068
        %v1071 = vmul.f32 %v1043, %v1069
        %v1072 = vmul.f32 %v1058, %v1070
        %1073 = vst [vmem:[%s344] sm:$0xff] %v1071
        %1074 = vst [vmem:[%s344 + $0x8] sm:$0xff] %v1072
        %1075 = vst [vmem:[%s351] sm:$0xff] %v1067
        %1076 = vst [vmem:[%s351 + $0x8] sm:$0xff] %v1068
        %s1077 = sand.u32 %s158, 1
        %s1078 = scalar_lea.sflag [#allocation6], %s1077
        %s1079 = sand.u32 %s158, 1
        %s1080 = smul.addr %s1079, 16
        %s1081 = scalar_lea.vmem [#allocation10], %s1080
        %s1082 = sand.u32 %s184, 1
        %s1083 = scalar_lea.sflag [#allocation12], %s1082
        %s1084 = sand.u32 %s184, 1
        %s1085 = smul.addr %s1084, 16
        %s1086 = scalar_lea.vmem [#allocation11], %s1085
        // Predicated region
        $region53: #{tpu_custom_call.1} parent=39 // pred_check
          %p1087 = pneg %p168
        $region54: #{tpu_custom_call.1} parent=39 // pred_check_branch
          %1089 = sbr.rel (%p1087) target = $region56
        $region55: #{tpu_custom_call.1} parent=39 // pred_region
          %1091 = vsyncadd %s1078, 0
          %s1092 = smul.addr %s30, 2
          %s1093 = smul.addr %s1092, 8
          %s1094 = scalar_lea.hbm %s5, %s1093
          %s1096 = sshll.u32 %s1081, 4
          %s1097 = int_to_ptr.vmem [resolvable:$true] %s1096
          %s1098 = sshll.u32 %s1094, 4
          %s1099 = int_to_ptr.hbm [resolvable:$true] %s1098
          %1101 = dma.vmem_to_hbm [thread:$0]  %s1097, 256, %s1099, %s1078
        $region56: #{tpu_custom_call.1} parent=39 // pred_fallthru
          _
        // Predicated region
        $region57: #{tpu_custom_call.1} parent=39 // pred_check
          %p1102 = pneg %p194
        $region58: #{tpu_custom_call.1} parent=39 // pred_check_branch
          %1104 = sbr.rel (%p1102) target = $region60
        $region59: #{tpu_custom_call.1} parent=39 // pred_region
          %1106 = vsyncadd %s1083, 0
          %s1107 = smul.addr %s30, 2
          %s1108 = smul.addr %s1107, 8
          %s1109 = scalar_lea.hbm %s6, %s1108
          %s1111 = sshll.u32 %s1086, 4
          %s1112 = int_to_ptr.vmem [resolvable:$true] %s1111
          %s1113 = sshll.u32 %s1109, 4
          %s1114 = int_to_ptr.hbm [resolvable:$true] %s1113
          %1116 = dma.vmem_to_hbm [thread:$0]  %s1112, 256, %s1114, %s1083
        $region60: #{tpu_custom_call.1} parent=39 // pred_fallthru
          _
      $region40: #{tpu_custom_call.1} parent=5 // pred_fallthru
        _
      %p1117 = scmp.le.s32.totalorder 2, %s25
      // Predicated region
      $region61: #{tpu_custom_call.1} parent=5 // pred_check
        %p1118 = pneg %p1117
      $region62: #{tpu_custom_call.1} parent=5 // pred_check_branch
        %1120 = sbr.rel (%p1118) target = $region64
      $region63: #{tpu_custom_call.1} parent=5 // pred_region
        %s1121 = ssub.s32 %s25, 2
        // Predicated region
        $region65: #{tpu_custom_call.1} parent=63 // pred_check
          %p1122 = pneg %p174
        $region66: #{tpu_custom_call.1} parent=63 // pred_check_branch
          %1124 = sbr.rel (%p1122) target = $region68
        $region67: #{tpu_custom_call.1} parent=63 // pred_region
          %s1125 = sand.u32 %s159, 1
          %s1126 = scalar_lea.sflag [#allocation6], %s1125
          %s1127 = sand.u32 %s159, 1
          %s1128 = smul.addr %s1127, 16
          %s1129 = scalar_lea.vmem [#allocation10], %s1128
          %1131 = dma.done %s1126, 256
        $region68: #{tpu_custom_call.1} parent=63 // pred_fallthru
          _
        // Predicated region
        $region69: #{tpu_custom_call.1} parent=63 // pred_check
          %p1132 = pneg %p200
        $region70: #{tpu_custom_call.1} parent=63 // pred_check_branch
          %1134 = sbr.rel (%p1132) target = $region72
        $region71: #{tpu_custom_call.1} parent=63 // pred_region
          %s1135 = sand.u32 %s185, 1
          %s1136 = scalar_lea.sflag [#allocation12], %s1135
          %s1137 = sand.u32 %s185, 1
          %s1138 = smul.addr %s1137, 16
          %s1139 = scalar_lea.vmem [#allocation11], %s1138
          %1141 = dma.done %s1136, 256
        $region72: #{tpu_custom_call.1} parent=63 // pred_fallthru
          _
      $region64: #{tpu_custom_call.1} parent=5 // pred_fallthru
        _
    $region6: #{tpu_custom_call.1} parent=1 // loop_footer
      %s29 = sadd.s32 1, %s25
    $region7: #{tpu_custom_call.1} parent=1 // loop_footer_branch
      %24 = sbr.rel target = $region3
    $region8: #{tpu_custom_call.1} parent=1 // loop_exit
      _
    %1142 = vsyncpa [#allocation5], 1
    %s1143 = scalar_lea.sflag [#allocation5], 1
    %1144 = vsyncpa %s1143, 1
    %1145 = vsyncpa [#allocation8], 1
    %s1146 = scalar_lea.sflag [#allocation8], 1
    %1147 = vsyncpa %s1146, 1
    %1148 = vsyncpa [#allocation6], 1
    %s1149 = scalar_lea.sflag [#allocation6], 1
    %1150 = vsyncpa %s1149, 1
    %1151 = vsyncpa [#allocation12], 1
    %s1152 = scalar_lea.sflag [#allocation12], 1
    %1153 = vsyncpa %s1152, 1

</llo_original>
